<compile_context>
chip_gen: v7x
topology: tpu7x:2x2x1
jax: 0.10.0
libtpu: 0.0.40
codegen_flags: <defaults>
</compile_context>

<pallas_src>
import functools

import jax
import jax.numpy as jnp
from jax.experimental import pallas as pl
from jax.experimental.pallas import tpu as pltpu


# ----------------------- single-pass kernel (N*C resident on sublanes) ------

def _contrast_kernel(c_ref, x_ref, o_ref):
    # c_ref: SMEM (1,) f32 scalar; x_ref/o_ref: (nc, tile_hw) VMEM blocks.
    c = c_ref[0]
    xv = x_ref[...].astype(jnp.float32)
    mean = jnp.mean(xv, axis=0, keepdims=True)          # per-lane over all N*C
    y = xv * c + mean * (1.0 - c)
    o_ref[...] = jnp.clip(y, 0.0, 1.0).astype(o_ref.dtype)


# ----------------------- two-pass kernels (large N*C fallback) --------------

def _mean_kernel(nc_total, tile_nc, x_ref, mean_ref, acc_ref):
    # grid = (hw tiles, nc tiles); nc axis is last ("arbitrary", reduction).
    k = pl.program_id(1)

    @pl.when(k == 0)
    def _():
        acc_ref[...] = jnp.zeros_like(acc_ref)

    # Mask rows past nc_total (ragged last nc block reads unspecified data).
    rows = jax.lax.broadcasted_iota(jnp.int32, x_ref.shape, 0) + k * tile_nc
    xv = jnp.where(rows < nc_total, x_ref[...].astype(jnp.float32), 0.0)
    acc_ref[...] += jnp.sum(xv, axis=0, keepdims=True)

    @pl.when(k == pl.num_programs(1) - 1)
    def _():
        mean_ref[...] = acc_ref[...] * (1.0 / nc_total)


def _apply_kernel(c_ref, x_ref, mean_ref, o_ref):
    c = c_ref[0]
    y = x_ref[...].astype(jnp.float32) * c + mean_ref[...] * (1.0 - c)
    o_ref[...] = jnp.clip(y, 0.0, 1.0).astype(o_ref.dtype)


# ----------------------- sizing helpers --------------------------------------

def _round_up(v: int, m: int) -> int:
    return ((v + m - 1) // m) * m


def _vmem_budgets():
    """(physical VMEM bytes, per-block budget bytes), generation-aware."""
    vmem_cap = 64 << 20  # conservative default = v7x per-TensorCore VMEM
    try:
        info = pltpu.get_tpu_info()
        cap = int(getattr(info, "vmem_capacity_bytes", 0))
        if cap > 0:
            vmem_cap = cap
    except Exception:
        pass
    # ~vmem/12 per block (v7x ~5.3 MiB, v5e/v6e capped at 8 MiB) leaves room
    # for double-buffered in+out plus elementwise temporaries.
    block_budget = min(8 << 20, max(1 << 20, vmem_cap // 12))
    return vmem_cap, block_budget


def _vmem_limit(block_bytes: int, vmem_cap: int) -> int:
    return int(min(int(0.75 * vmem_cap),
                   max(32 << 20, 8 * block_bytes + (8 << 20))))


def _pick_tile_hw(hw: int, nc: int, itemsize: int, block_budget_bytes: int) -> int:
    """Lane tile (multiple of 128) for the single-pass layout with all N*C
    rows resident.  Returns 0 if even a 128-lane block exceeds the budget."""
    max_lanes = (block_budget_bytes // max(1, nc * itemsize)) // 128 * 128
    if max_lanes < 128:
        return 0
    hw_pad = _round_up(hw, 128)
    tile = min(max_lanes, hw_pad)
    # Prefer >= 4 grid steps (overlapped in/out DMA) while staying lane-dense.
    if tile > 512:
        desired = max(512, _round_up(pl.cdiv(hw_pad, 4), 128))
        if desired < tile:
            tile = desired
    # Bias toward an even step count (v7x megacore shares the parallel axis
    # across 2 TensorCores), never dropping below 512 lanes.
    steps = pl.cdiv(hw, tile)
    if steps > 1 and steps % 2 == 1:
        smaller = tile - 128
        if smaller >= 512 and pl.cdiv(hw, smaller) % 2 == 0:
            tile = smaller
    return tile


# ----------------------- pallas_call wrappers --------------------------------

def _contrast_single_pass(x2, contrast_arr, nc, hw, tile_hw, itemsize, vmem_cap):
    grid = (pl.cdiv(hw, tile_hw),)
    block_bytes = nc * tile_hw * itemsize
    return pl.pallas_call(
        _contrast_kernel,
        out_shape=jax.ShapeDtypeStruct((nc, hw), x2.dtype),
        grid_spec=pltpu.PrefetchScalarGridSpec(
            num_scalar_prefetch=0,
            grid=grid,
            in_specs=[
                pl.BlockSpec(memory_space=pltpu.MemorySpace.SMEM),   # contrast
                pl.BlockSpec((nc, tile_hw), lambda j: (0, j)),
            ],
            out_specs=pl.BlockSpec((nc, tile_hw), lambda j: (0, j)),
        ),
        compiler_params=pltpu.CompilerParams(
            dimension_semantics=("parallel",),
            vmem_limit_bytes=_vmem_limit(block_bytes, vmem_cap),
        ),
    )(contrast_arr, x2)


def _contrast_two_pass(x2, contrast_arr, nc, hw, itemsize, block_budget, vmem_cap):
    # Lane-dense spatial tile, then as many N*C rows as fit the block budget.
    tile_hw = min(_round_up(hw, 128), 2048)
    tile_nc = (block_budget // max(1, tile_hw * itemsize)) // 8 * 8
    tile_nc = max(8, min(tile_nc, _round_up(nc, 8)))
    grid = (pl.cdiv(hw, tile_hw), pl.cdiv(nc, tile_nc))
    block_bytes = tile_nc * tile_hw * itemsize
    vmem_limit = _vmem_limit(block_bytes, vmem_cap)

    # Pass 1: per-lane mean over all N*C rows, f32 accumulation in scratch.
    mean = pl.pallas_call(
        functools.partial(_mean_kernel, nc, tile_nc),
        out_shape=jax.ShapeDtypeStruct((1, hw), jnp.float32),
        grid_spec=pltpu.PrefetchScalarGridSpec(
            num_scalar_prefetch=0,
            grid=grid,
            in_specs=[pl.BlockSpec((tile_nc, tile_hw), lambda j, k: (k, j))],
            out_specs=pl.BlockSpec((1, tile_hw), lambda j, k: (0, j)),
            scratch_shapes=[pltpu.VMEM((1, tile_hw), jnp.float32)],
        ),
        compiler_params=pltpu.CompilerParams(
            dimension_semantics=("parallel", "arbitrary"),
            vmem_limit_bytes=vmem_limit,
        ),
    )(x2)

    # Pass 2: elementwise apply; mean broadcast along the nc axis.
    return pl.pallas_call(
        _apply_kernel,
        out_shape=jax.ShapeDtypeStruct((nc, hw), x2.dtype),
        grid_spec=pltpu.PrefetchScalarGridSpec(
            num_scalar_prefetch=0,
            grid=grid,
            in_specs=[
                pl.BlockSpec(memory_space=pltpu.MemorySpace.SMEM),   # contrast
                pl.BlockSpec((tile_nc, tile_hw), lambda j, k: (k, j)),
                pl.BlockSpec((1, tile_hw), lambda j, k: (0, j)),
            ],
            out_specs=pl.BlockSpec((tile_nc, tile_hw), lambda j, k: (k, j)),
        ),
        compiler_params=pltpu.CompilerParams(
            dimension_semantics=("parallel", "parallel"),
            vmem_limit_bytes=vmem_limit,
        ),
    )(contrast_arr, x2, mean)


def contrast_forward(x: jax.Array, contrast: float = 1.0,
                     force_two_pass: bool = False) -> jax.Array:
    """x: (N, C, H, W) array in [0, 1]. Returns same shape/dtype."""
    n, c, h, w = x.shape
    nc = n * c
    hw = h * w
    x2 = x.reshape(nc, hw)            # reduction axis first, lane-dense last
    itemsize = jnp.dtype(x.dtype).itemsize

    vmem_cap, block_budget = _vmem_budgets()
    contrast_arr = jnp.asarray([contrast], dtype=jnp.float32)

    tile_hw = 0 if force_two_pass else _pick_tile_hw(hw, nc, itemsize, block_budget)
    if tile_hw > 0:
        out2 = _contrast_single_pass(x2, contrast_arr, nc, hw, tile_hw,
                                     itemsize, vmem_cap)
    else:
        out2 = _contrast_two_pass(x2, contrast_arr, nc, hw, itemsize,
                                  block_budget, vmem_cap)
    return out2.reshape(n, c, h, w)


def contrast_reference(x: jax.Array, contrast: float = 1.0) -> jax.Array:
    means = jnp.mean(x, axis=(0, 1), keepdims=True)
    return jnp.clip((x - means) * contrast + means, 0.0, 1.0)


if __name__ == "__main__":
    key = jax.random.PRNGKey(0)
    # Small NCHW input, values in [0, 1] like an image tensor.
    x = jax.random.uniform(key, (2, 4, 16, 16), dtype=jnp.float32)
    contrast = 1.7  # module __init__ arg

    ref = contrast_reference(x, contrast=contrast)

    # Main (single-pass, N*C resident) path.
    out = jax.block_until_ready(contrast_forward(x, contrast=contrast))
    assert out.shape == x.shape and out.dtype == x.dtype
    assert jnp.allclose(out, ref, atol=1e-5, rtol=1e-5), "single-pass mismatch"

    # Large-nc fallback (two-pass) path, forced on the same small input.
    out2p = jax.block_until_ready(
        contrast_forward(x, contrast=contrast, force_two_pass=True))
    assert jnp.allclose(out2p, ref, atol=1e-5, rtol=1e-5), "two-pass mismatch"

    print("KERNEL_OK")
</pallas_src>

<mosaic_0001>
module attributes {stable_mosaic.version = 11 : i64} {
  func.func @_contrast_kernel(%arg0: i32, %arg1: memref<1xf32, #tpu.memory_space<smem>>, %arg2: memref<8x256xf32, #tpu.memory_space<vmem>>, %arg3: memref<8x256xf32, #tpu.memory_space<vmem>>) attributes {dimension_semantics = [#tpu.dimension_semantics<parallel>], iteration_bounds = array<i64: 1>, scalar_prefetch = 0 : i64, scratch_operands = 0 : i64, tpu.core_type = #tpu.core_type<tc>, window_params = [{transform_indices = @transform_0, window_bounds = array<i64: 1>}, {transform_indices = @transform_1, window_bounds = array<i64: 8, 256>}, {transform_indices = @transform_2, window_bounds = array<i64: 8, 256>}]} {
    %c0 = arith.constant 0 : index
    %0 = memref.load %arg1[%c0] : memref<1xf32, #tpu.memory_space<smem>>
    %c0_0 = arith.constant 0 : index
    %c0_1 = arith.constant 0 : index
    %1 = vector.load %arg2[%c0_0, %c0_1] : memref<8x256xf32, #tpu.memory_space<vmem>>, vector<8x256xf32>
    %cst = arith.constant dense<0.000000e+00> : vector<256xf32>
    %2 = vector.multi_reduction <add>, %1, %cst [0] : vector<8x256xf32> to vector<256xf32>
    %3 = vector.shape_cast %2 : vector<256xf32> to vector<1x256xf32>
    %cst_2 = arith.constant 8.000000e+00 : f32
    %4 = vector.broadcast %cst_2 : f32 to vector<1x256xf32>
    %5 = arith.divf %3, %4 : vector<1x256xf32>
    %6 = vector.broadcast %0 : f32 to vector<8x256xf32>
    %7 = arith.mulf %1, %6 : vector<8x256xf32>
    %cst_3 = arith.constant 1.000000e+00 : f32
    %8 = arith.subf %cst_3, %0 : f32
    %9 = vector.broadcast %8 : f32 to vector<1x256xf32>
    %10 = arith.mulf %5, %9 : vector<1x256xf32>
    %11 = vector.broadcast %10 : vector<1x256xf32> to vector<8x256xf32>
    %12 = arith.addf %7, %11 : vector<8x256xf32>
    %cst_4 = arith.constant 0.000000e+00 : f32
    %cst_5 = arith.constant 1.000000e+00 : f32
    %13 = vector.broadcast %cst_4 : f32 to vector<8x256xf32>
    %14 = arith.maximumf %13, %12 : vector<8x256xf32>
    %15 = vector.broadcast %cst_5 : f32 to vector<8x256xf32>
    %16 = arith.minimumf %15, %14 : vector<8x256xf32>
    %c0_6 = arith.constant 0 : index
    %c0_7 = arith.constant 0 : index
    %17 = vector.load %arg3[%c0_6, %c0_7] : memref<8x256xf32, #tpu.memory_space<vmem>>, vector<8x256xf32>
    tpu.vector_store %arg3[%c0_6, %c0_7], %16 {strides = array<i32>} : memref<8x256xf32, #tpu.memory_space<vmem>>, vector<8x256xf32>,
    return
  }
  func.func @transform_0(%arg0: i32) -> i32 {
    %c0_i32 = arith.constant 0 : i32
    %c0_i32_0 = arith.constant 0 : i32
    return %c0_i32 : i32
  }
  func.func @transform_1(%arg0: i32) -> (i32, i32) {
    %c0_i32 = arith.constant 0 : i32
    %c0_i32_0 = arith.constant 0 : i32
    return %c0_i32, %arg0 : i32, i32
  }
  func.func @transform_2(%arg0: i32) -> (i32, i32) {
    %c0_i32 = arith.constant 0 : i32
    %c0_i32_0 = arith.constant 0 : i32
    return %c0_i32, %arg0 : i32, i32
  }
}

</mosaic_0001>

<llo_original>
// kernel: tpu_custom_call.1
$region0: #{tpu_custom_call.1}
  #allocation0 [shape = 'u32[]', space=smem, size = 0x4, offset = 0x4, fixed_abs, tag = 'smem constant byte address 0x4 - core index']
  #allocation1 [shape = 'u32[144,128]{1,0:T(1,128)}', space=vmem, size = 0x12000, scoped, tag = 'internal scratch']
  #allocation2 [shape = 'f32[1]{0:T(128)S(6)}', space=smem, size = 0x200, scoped, tag = 'scoped memory for tpu_custom_call.1']
  %s0 = inlined_call_operand.<no memory space> [shape: f32[1], index: 0, kind: input, shape index: {}]
  %s1 = inlined_call_operand.hbm [shape: f32[8,256], index: 1, kind: input, shape index: {}]
  %s2 = inlined_call_operand.hbm [shape: f32[8,256], index: 2, kind: output, shape index: {}]
  %s3 = sld [smem:[#allocation0]]
  $region22: #{tpu_custom_call.1} parent=0
    _
  %s5 = ssub.s32 1, %s3
  %s6 = scalar_select 0, %s5, %s3
  %7 = sst [smem:[#allocation2]] %s0
  $region1: #{tpu_custom_call.1} parent=0
    #allocation3 [shape = 'u8[8192]{0}', space=vmem, size = 0x2000, scoped, tag = 'input window, operand 1, single buffered']
    #allocation4 [shape = 's32[1]{0}', space=sflag, size = 0x4, scoped, tag = 'scoped memory for tpu_custom_call.1']
    #allocation5 [shape = 's32[1]{0}', space=sflag, size = 0x4, scoped, tag = 'scoped memory for tpu_custom_call.1']
    #allocation6 [shape = 'u8[8192]{0}', space=vmem, size = 0x2000, scoped, tag = 'output window, operand 0, single buffered']
    %8 = vsyncpa [#allocation4], 0
    %9 = vsyncpa [#allocation5], 0
    // Predicated region
    $region2: #{tpu_custom_call.1} parent=1 // pred_check
      _
    $region3: #{tpu_custom_call.1} parent=1 // pred_check_branch
      %11 = sbr.rel (0) target = $region5
    $region4: #{tpu_custom_call.1} parent=1 // pred_region
      _
    $region5: #{tpu_custom_call.1} parent=1 // pred_fallthru
      _
    // Predicated region
    $region6: #{tpu_custom_call.1} parent=1 // pred_check
      _
    $region7: #{tpu_custom_call.1} parent=1 // pred_check_branch
      %13 = sbr.rel (0) target = $region9
    $region8: #{tpu_custom_call.1} parent=1 // pred_region
      %s15 = ssub.s32 256, 256
      %16 = vsyncadd [#allocation4], %s15
      %s18 = sshll.u32 [#allocation3], 4
      %s19 = int_to_ptr.vmem [resolvable:$true] %s18
      %21 = dma.hbm_to_vmem [thread:$0]  %s1, 256, %s19, [#allocation4]
    $region9: #{tpu_custom_call.1} parent=1 // pred_fallthru
      _
    // Predicated region
    $region10: #{tpu_custom_call.1} parent=1 // pred_check
      _
    $region11: #{tpu_custom_call.1} parent=1 // pred_check_branch
      %23 = sbr.rel (0) target = $region13
    $region12: #{tpu_custom_call.1} parent=1 // pred_region
      %24 = dma.done [#allocation4], 256
    $region13: #{tpu_custom_call.1} parent=1 // pred_fallthru
      _
    %s25 = sld [smem:[#allocation2]]
    %v26 = vld [vmem:[#allocation3] sm:$0xff]
    %v27 = vld [vmem:[#allocation3 + $0x8] sm:$0xff]
    %v28 = vrot.slane %v26, 4
    %v29 = vadd.f32 %v26, %v28
    %v30 = vrot.slane %v29, 2
    %v31 = vadd.f32 %v29, %v30
    %v32 = vrot.slane %v31, 1
    %v33 = vadd.f32 %v31, %v32
    %v34 = vrot.slane %v27, 4
    %v35 = vadd.f32 %v27, %v34
    %v36 = vrot.slane %v35, 2
    %v37 = vadd.f32 %v35, %v36
    %v38 = vrot.slane %v37, 1
    %v39 = vadd.f32 %v37, %v38
    %v40 = vrcp.pop 8.0
    %v41 = vmul.f32 %v33, %v40
    %v42 = vmul.f32 %v39, %v40
    %v43 = vstv %s25
    %v44 = vmul.f32 %v26, %v43
    %v45 = vmul.f32 %v27, %v43
    %s46 = ssub.f32 1.0, %s25
    %v47 = vstv %s46
    %v48 = vmul.f32 %v41, %v47
    %v49 = vmul.f32 %v42, %v47
    %v50 = vadd.f32 %v44, %v48
    %v51 = vadd.f32 %v45, %v49
    %v52 = vmax.f32 %v50, 0.0
    %v53 = vmax.f32 %v51, 0.0
    %v54 = vmin.f32 %v52, 1.0
    %v55 = vmin.f32 %v53, 1.0
    %56 = vst [vmem:[#allocation6] sm:$0xff] %v54
    %57 = vst [vmem:[#allocation6 + $0x8] sm:$0xff] %v55
    // Predicated region
    $region14: #{tpu_custom_call.1} parent=1 // pred_check
      _
    $region15: #{tpu_custom_call.1} parent=1 // pred_check_branch
      %59 = sbr.rel (0) target = $region17
    $region16: #{tpu_custom_call.1} parent=1 // pred_region
      %s61 = ssub.s32 256, 256
      %62 = vsyncadd [#allocation5], %s61
      %s64 = sshll.u32 [#allocation6], 4
      %s65 = int_to_ptr.vmem [resolvable:$true] %s64
      %67 = dma.vmem_to_hbm [thread:$0]  %s65, 256, %s2, [#allocation5]
    $region17: #{tpu_custom_call.1} parent=1 // pred_fallthru
      _
    // Predicated region
    $region18: #{tpu_custom_call.1} parent=1 // pred_check
      _
    $region19: #{tpu_custom_call.1} parent=1 // pred_check_branch
      %69 = sbr.rel (0) target = $region21
    $region20: #{tpu_custom_call.1} parent=1 // pred_region
      %70 = dma.done [#allocation5], 256
    $region21: #{tpu_custom_call.1} parent=1 // pred_fallthru
      _
    %71 = vsyncpa [#allocation4], 1
    %72 = vsyncpa [#allocation5], 1

</llo_original>
